<compile_context>
chip_gen: v7x
topology: tpu7x:2x2x1
jax: 0.10.0
libtpu: 0.0.40
codegen_flags: <defaults>
</compile_context>

<pallas_src>
import jax
import jax.numpy as jnp
from jax.experimental import pallas as pl
from jax.experimental.pallas import tpu as pltpu

_LANES = 128
_SUBLANES = 8
_MIB = 1024 * 1024


def _cdiv(a, b):
    return -(-a // b)


def _round_up(x, m):
    return ((x + m - 1) // m) * m


def _detect_vmem_capacity_bytes():
    """Best-effort VMEM capacity query; conservative fallback."""
    try:
        info = pltpu.get_tpu_info()
        cap = getattr(info, "vmem_capacity_bytes", None)
        if cap:
            return int(cap)
    except Exception:
        pass
    try:
        kind = jax.devices()[0].device_kind.lower()
        if "v5" in kind or "v6" in kind:
            return 128 * _MIB
    except Exception:
        pass
    return 64 * _MIB  # assume v7x-like (smaller VMEM, 2 TCs) if unsure


def _make_weighted_sum_kernel(weights, n_inputs):
    """o = sum_i in_i * w[i], weights baked in as compile-time constants."""
    weights = tuple(float(w) for w in weights)

    def kernel(*refs):
        in_refs = refs[:n_inputs]
        o_ref = refs[n_inputs]
        acc = None
        for ref, w in zip(in_refs, weights):
            x = ref[...].astype(jnp.float32)
            term = x if w == 1.0 else x * jnp.float32(w)
            acc = term if acc is None else acc + term
        o_ref[...] = acc.astype(o_ref.dtype)

    return kernel


def weighted_loss(losses, weights=(1.0, 2.0)):
    """Pallas implementation of WeightedLoss.forward(*losses)."""
    losses = tuple(losses)
    if len(losses) > len(weights):
        raise ValueError(
            f"WeightedLoss got {len(losses)} loss tensors but only "
            f"{len(weights)} weights; provide one weight per loss.")
    weights = tuple(float(w) for w in weights)[:len(losses)]
    n = len(losses)

    orig_shape = losses[0].shape
    total = int(losses[0].size)
    assert total > 0, "empty loss tensor"
    for x in losses[1:]:
        assert x.shape == orig_shape, "all loss tensors must share a shape"

    out_dtype = jnp.result_type(*[x.dtype for x in losses])
    itemsize = max([jnp.dtype(x.dtype).itemsize for x in losses]
                   + [jnp.dtype(out_dtype).itemsize])

    # ---- generation-aware block sizing -------------------------------------
    vmem_cap = _detect_vmem_capacity_bytes()
    small_vmem = vmem_cap < 96 * _MIB          # v7x-like: 64 MiB VMEM, 2 TCs
    if small_vmem:
        target_block_bytes = 4 * _MIB
        vmem_budget_bytes = 24 * _MIB
        vmem_limit_bytes = 32 * _MIB
    else:                                       # v5e / v6e: 128 MiB VMEM, 1 TC
        target_block_bytes = 8 * _MIB
        vmem_budget_bytes = 48 * _MIB
        vmem_limit_bytes = 64 * _MIB

    # ---- lane-dense layout: pad only to a multiple of 128 ------------------
    rows = _cdiv(total, _LANES)                 # array rows (NOT tile-padded)
    padded = rows * _LANES
    bytes_per_row = _LANES * itemsize

    tile_rows = max(_SUBLANES, target_block_bytes // bytes_per_row)
    vmem_cap_rows = max(_SUBLANES,
                        vmem_budget_bytes // ((n + 1) * 2 * bytes_per_row))
    tile_rows = min(tile_rows, vmem_cap_rows)
    # On 2-TC parts, keep >= 2 grid steps so both cores stream, but only when
    # each half is still a healthy (>= ~2 MiB) block.
    if small_vmem and rows * bytes_per_row >= 4 * _MIB:
        tile_rows = min(tile_rows, _round_up(_cdiv(rows, 2), _SUBLANES))
    # Never tile larger than the (sublane-rounded) array itself.
    tile_rows = min(tile_rows, _round_up(rows, _SUBLANES))
    tile_rows = _round_up(tile_rows, _SUBLANES)

    grid_steps = _cdiv(rows, tile_rows)         # last block may be partial

    flat = []
    for x in losses:
        v = x.reshape(-1)
        if padded != total:                     # ragged: pad < 128 elements
            v = jnp.pad(v, (0, padded - total))
        flat.append(v.reshape(rows, _LANES))

    cost = pl.CostEstimate(
        flops=(2 * n - 1) * total,
        transcendentals=0,
        bytes_accessed=(n + 1) * total * itemsize)

    blk = pl.BlockSpec((tile_rows, _LANES), lambda i: (i, 0))
    out2d = pl.pallas_call(
        _make_weighted_sum_kernel(weights, n),
        out_shape=jax.ShapeDtypeStruct((rows, _LANES), out_dtype),
        grid=(grid_steps,),
        in_specs=[blk] * n,
        out_specs=blk,
        compiler_params=pltpu.CompilerParams(
            dimension_semantics=("parallel",),
            vmem_limit_bytes=vmem_limit_bytes),
        cost_estimate=cost,
    )(*flat)

    out = out2d.reshape(-1)
    if padded != total:
        out = out[:total]
    return out.reshape(orig_shape)


if __name__ == "__main__":
    key = jax.random.PRNGKey(0)
    k1, k2, k3, k4 = jax.random.split(key, 4)

    weights = (1.0, 2.0)  # WeightedLoss(weight=[1, 2])

    # Two per-pixel "loss maps" in NCHW, as the module's forward implies.
    shape = (2, 4, 16, 16)
    loss_a = jax.random.uniform(k1, shape, dtype=jnp.float32)
    loss_b = jax.random.uniform(k2, shape, dtype=jnp.float32)

    out = weighted_loss((loss_a, loss_b), weights)
    out = jax.block_until_ready(out)

    ref = loss_a * weights[0] + loss_b * weights[1]
    assert out.shape == shape
    assert jnp.allclose(out, ref, atol=1e-6, rtol=1e-6)

    # Ragged shape (size not a multiple of 128) exercises the pad/slice path.
    rshape = (3, 5, 7)
    ra = jax.random.normal(k3, rshape, dtype=jnp.float32)
    rb = jax.random.normal(k4, rshape, dtype=jnp.float32)
    rout = jax.block_until_ready(weighted_loss((ra, rb), weights))
    rref = ra * weights[0] + rb * weights[1]
    assert rout.shape == rshape
    assert jnp.allclose(rout, rref, atol=1e-6, rtol=1e-6)

    print("KERNEL_OK")
</pallas_src>

<mosaic_0001>
module attributes {stable_mosaic.version = 11 : i64} {
  func.func @kernel(%arg0: i32, %arg1: memref<16x128xf32, #tpu.memory_space<vmem>>, %arg2: memref<16x128xf32, #tpu.memory_space<vmem>>, %arg3: memref<16x128xf32, #tpu.memory_space<vmem>>) attributes {dimension_semantics = [#tpu.dimension_semantics<parallel>], iteration_bounds = array<i64: 1>, scalar_prefetch = 0 : i64, scratch_operands = 0 : i64, tpu.core_type = #tpu.core_type<tc>, window_params = [{transform_indices = @transform_0, window_bounds = array<i64: 16, 128>}, {transform_indices = @transform_1, window_bounds = array<i64: 16, 128>}, {transform_indices = @transform_2, window_bounds = array<i64: 16, 128>}]} {
    %c0 = arith.constant 0 : index
    %c0_0 = arith.constant 0 : index
    %0 = vector.load %arg1[%c0, %c0_0] : memref<16x128xf32, #tpu.memory_space<vmem>>, vector<16x128xf32>
    %c0_1 = arith.constant 0 : index
    %c0_2 = arith.constant 0 : index
    %1 = vector.load %arg2[%c0_1, %c0_2] : memref<16x128xf32, #tpu.memory_space<vmem>>, vector<16x128xf32>
    %cst = arith.constant 2.000000e+00 : f32
    %2 = vector.broadcast %cst : f32 to vector<16x128xf32>
    %3 = arith.mulf %1, %2 : vector<16x128xf32>
    %4 = arith.addf %0, %3 : vector<16x128xf32>
    %c0_3 = arith.constant 0 : index
    %c0_4 = arith.constant 0 : index
    %5 = vector.load %arg3[%c0_3, %c0_4] : memref<16x128xf32, #tpu.memory_space<vmem>>, vector<16x128xf32>
    tpu.vector_store %arg3[%c0_3, %c0_4], %4 {strides = array<i32>} : memref<16x128xf32, #tpu.memory_space<vmem>>, vector<16x128xf32>,
    return
  }
  func.func @transform_0(%arg0: i32) -> (i32, i32) {
    %c0_i32 = arith.constant 0 : i32
    %c0_i32_0 = arith.constant 0 : i32
    return %arg0, %c0_i32 : i32, i32
  }
  func.func @transform_1(%arg0: i32) -> (i32, i32) {
    %c0_i32 = arith.constant 0 : i32
    %c0_i32_0 = arith.constant 0 : i32
    return %arg0, %c0_i32 : i32, i32
  }
  func.func @transform_2(%arg0: i32) -> (i32, i32) {
    %c0_i32 = arith.constant 0 : i32
    %c0_i32_0 = arith.constant 0 : i32
    return %arg0, %c0_i32 : i32, i32
  }
}

</mosaic_0001>

<llo_original>
// kernel: tpu_custom_call.1
$region0: #{tpu_custom_call.1}
  #allocation0 [shape = 'u32[]', space=smem, size = 0x4, offset = 0x4, fixed_abs, tag = 'smem constant byte address 0x4 - core index']
  #allocation1 [shape = 'u32[144,128]{1,0:T(1,128)}', space=vmem, size = 0x12000, scoped, tag = 'internal scratch']
  %s0 = inlined_call_operand.hbm [shape: f32[16,128], index: 0, kind: input, shape index: {}]
  %s1 = inlined_call_operand.hbm [shape: f32[16,128], index: 1, kind: input, shape index: {}]
  %s2 = inlined_call_operand.hbm [shape: f32[16,128], index: 2, kind: output, shape index: {}]
  %s3 = sld [smem:[#allocation0]]
  $region26: #{tpu_custom_call.1} parent=0
    _
  %s5 = ssub.s32 1, %s3
  %s6 = scalar_select 0, %s5, %s3
  $region1: #{tpu_custom_call.1} parent=0
    #allocation2 [shape = 'u8[8192]{0}', space=vmem, size = 0x2000, scoped, tag = 'input window, operand 0, single buffered']
    #allocation3 [shape = 's32[1]{0}', space=sflag, size = 0x4, scoped, tag = 'scoped memory for tpu_custom_call.1']
    #allocation4 [shape = 's32[1]{0}', space=sflag, size = 0x4, scoped, tag = 'scoped memory for tpu_custom_call.1']
    #allocation5 [shape = 'u8[8192]{0}', space=vmem, size = 0x2000, scoped, tag = 'input window, operand 1, single buffered']
    #allocation6 [shape = 's32[1]{0}', space=sflag, size = 0x4, scoped, tag = 'scoped memory for tpu_custom_call.1']
    #allocation7 [shape = 'u8[8192]{0}', space=vmem, size = 0x2000, scoped, tag = 'output window, operand 0, single buffered']
    %7 = vsyncpa [#allocation3], 0
    %8 = vsyncpa [#allocation6], 0
    %9 = vsyncpa [#allocation4], 0
    // Predicated region
    $region2: #{tpu_custom_call.1} parent=1 // pred_check
      _
    $region3: #{tpu_custom_call.1} parent=1 // pred_check_branch
      %11 = sbr.rel (0) target = $region5
    $region4: #{tpu_custom_call.1} parent=1 // pred_region
      %s13 = ssub.s32 256, 256
      %14 = vsyncadd [#allocation3], %s13
      %s15 = sshll.u32 [#allocation2], 4
      %s16 = int_to_ptr.vmem [resolvable:$true] %s15
      %21 = dma.hbm_to_vmem [thread:$0]  %s0, 256, %s16, [#allocation3], 128, 128, 8
    $region5: #{tpu_custom_call.1} parent=1 // pred_fallthru
      _
    // Predicated region
    $region6: #{tpu_custom_call.1} parent=1 // pred_check
      _
    $region7: #{tpu_custom_call.1} parent=1 // pred_check_branch
      %23 = sbr.rel (0) target = $region9
    $region8: #{tpu_custom_call.1} parent=1 // pred_region
      %s25 = ssub.s32 256, 256
      %26 = vsyncadd [#allocation6], %s25
      %s27 = sshll.u32 [#allocation5], 4
      %s28 = int_to_ptr.vmem [resolvable:$true] %s27
      %33 = dma.hbm_to_vmem [thread:$0]  %s1, 256, %s28, [#allocation6], 128, 128, 8
    $region9: #{tpu_custom_call.1} parent=1 // pred_fallthru
      _
    // Predicated region
    $region10: #{tpu_custom_call.1} parent=1 // pred_check
      _
    $region11: #{tpu_custom_call.1} parent=1 // pred_check_branch
      %35 = sbr.rel (0) target = $region13
    $region12: #{tpu_custom_call.1} parent=1 // pred_region
      %36 = dma.done [#allocation3], 256
    $region13: #{tpu_custom_call.1} parent=1 // pred_fallthru
      _
    // Predicated region
    $region14: #{tpu_custom_call.1} parent=1 // pred_check
      _
    $region15: #{tpu_custom_call.1} parent=1 // pred_check_branch
      %38 = sbr.rel (0) target = $region17
    $region16: #{tpu_custom_call.1} parent=1 // pred_region
      %39 = dma.done [#allocation6], 256
    $region17: #{tpu_custom_call.1} parent=1 // pred_fallthru
      _
    %v40 = vld [vmem:[#allocation2] sm:$0xff]
    %v41 = vld [vmem:[#allocation2 + $0x8] sm:$0xff]
    %v42 = vld [vmem:[#allocation5] sm:$0xff]
    %v43 = vld [vmem:[#allocation5 + $0x8] sm:$0xff]
    %v44 = vmul.f32 %v42, 2.0
    %v45 = vmul.f32 %v43, 2.0
    %v46 = vadd.f32 %v40, %v44
    %v47 = vadd.f32 %v41, %v45
    %48 = vst [vmem:[#allocation7] sm:$0xff] %v46
    %49 = vst [vmem:[#allocation7 + $0x8] sm:$0xff] %v47
    // Predicated region
    $region18: #{tpu_custom_call.1} parent=1 // pred_check
      _
    $region19: #{tpu_custom_call.1} parent=1 // pred_check_branch
      %51 = sbr.rel (0) target = $region21
    $region20: #{tpu_custom_call.1} parent=1 // pred_region
      %s53 = ssub.s32 256, 256
      %54 = vsyncadd [#allocation4], %s53
      %s55 = sshll.u32 [#allocation7], 4
      %s56 = int_to_ptr.vmem [resolvable:$true] %s55
      %61 = dma.vmem_to_hbm [thread:$0]  %s56, 256, %s2, [#allocation4], 128, 128, 8
    $region21: #{tpu_custom_call.1} parent=1 // pred_fallthru
      _
    // Predicated region
    $region22: #{tpu_custom_call.1} parent=1 // pred_check
      _
    $region23: #{tpu_custom_call.1} parent=1 // pred_check_branch
      %63 = sbr.rel (0) target = $region25
    $region24: #{tpu_custom_call.1} parent=1 // pred_region
      %64 = dma.done [#allocation4], 256
    $region25: #{tpu_custom_call.1} parent=1 // pred_fallthru
      _
    %65 = vsyncpa [#allocation3], 1
    %66 = vsyncpa [#allocation6], 1
    %67 = vsyncpa [#allocation4], 1

</llo_original>
